<compile_context>
chip_gen: v5e
topology: v5e:2x2
jax: 0.10.0
libtpu: 0.0.40
codegen_flags: <defaults>
</compile_context>

<pallas_src>
import math
import functools
import jax
import jax.numpy as jnp
from jax.experimental import pallas as pl
from jax.experimental.pallas import tpu as pltpu


def _round_up(x, m):
    return ((x + m - 1) // m) * m


def _attention_kernel(dec_ref, lens_ref, enc_ref, w_enc_ref, v_ref,
                      out_ref, scores_ref, *, t_chunk):
    # dec_ref    : (bb, H)        f32  hoisted decoder projection (+ bias)
    # lens_ref   : (1, bb)        i32  valid sequence length per batch row
    # enc_ref    : (T_pad, bb, H)      encoder outputs, native time-major layout
    # w_enc_ref  : (H, H)              encoder half of the Linear weight (transposed)
    # v_ref      : (1, H)         f32  score vector
    # out_ref    : (T_pad, bb)    f32  softmaxed attention energies (time-major)
    # scores_ref : (T_pad, bb)    f32  VMEM scratch for the raw scores
    T_pad, bb, H = enc_ref.shape
    n_chunks = T_pad // t_chunk

    # Loop-invariant operands: read once, outside the chunk loop.
    dec = dec_ref[...][None, :, :]          # (1, bb, H) f32
    v_vec = v_ref[...]                      # (1, H)     f32
    w = w_enc_ref[...]                      # (H, H)

    def chunk_body(c, carry):
        t0 = pl.multiple_of(c * t_chunk, t_chunk)
        enc_c = enc_ref[pl.ds(t0, t_chunk), :, :]                  # (tc, bb, H)
        # bb is sublane-aligned, so this merge is a free view (no VMEM relayout).
        pre = jnp.dot(enc_c.reshape(t_chunk * bb, H), w,
                      preferred_element_type=jnp.float32)
        pre = pre.reshape(t_chunk, bb, H) + dec                    # broadcast over time
        energy = jnp.tanh(pre)                                     # EUP, f32
        # Keep the v-reduction a lane (XLU) reduce, not an (H,1) matmul.
        scores_ref[pl.ds(t0, t_chunk), :] = jnp.sum(energy * v_vec, axis=-1)
        return carry

    jax.lax.fori_loop(0, n_chunks, chunk_body, 0, unroll=n_chunks <= 8)

    # Masking (src_len and padded time steps share the same path), then softmax over T.
    scores = scores_ref[...]                                       # (T_pad, bb)
    t_idx = jax.lax.broadcasted_iota(jnp.int32, (T_pad, bb), 0)
    scores = jnp.where(t_idx >= lens_ref[...], -1e18, scores)
    m = jnp.max(scores, axis=0, keepdims=True)
    e = jnp.exp(scores - m)
    out_ref[...] = e / jnp.sum(e, axis=0, keepdims=True)


def attention_forward(decoder_pre_hidden, encoder_outputs, attn_weight, attn_bias, v,
                      src_len=None, block_b=None, matmul_dtype=None):
    """
    decoder_pre_hidden : (1, B, H) float32
    encoder_outputs    : (T, B, H) float32   (consumed in this native layout - no HBM transpose)
    attn_weight        : (H, 2H)   float32   (nn.Linear(2H, H).weight)
    attn_bias          : (H,)      float32
    v                  : (H,)      float32
    src_len            : optional (B,) int   valid lengths (masking path)
    block_b            : optional batch block override (e.g. to force >=2 grid steps on v7x's
                         two TensorCores); rounded to alignment internally
    matmul_dtype       : optional dtype for the in-kernel matmul operands
                         (e.g. jnp.bfloat16 on v6e/v7x); accumulation stays f32
    returns            : (B, 1, T) float32
    """
    T, B, H = encoder_outputs.shape
    op_dtype = jnp.dtype(matmul_dtype) if matmul_dtype is not None else jnp.dtype(jnp.float32)
    itemsize = op_dtype.itemsize
    sublane = max(8, 32 // itemsize)              # 8 for f32, 16 for bf16 (packed sublanes)
    T8 = _round_up(T, 8)

    # ---- block sizing against a VMEM budget that also fits v7x (64 MiB physical) ----
    VMEM_BUDGET = 40 * 1024 * 1024
    fixed = 2 * H * H * itemsize + (4 << 20)      # resident w_enc (double-buffered) + chunk slack
    per_row = 2 * T8 * H * itemsize + 2 * H * 4 + 3 * T8 * 4
    avail = max(VMEM_BUDGET - fixed, per_row * sublane)
    max_bb = max(sublane, min(512, (avail // per_row) // sublane * sublane))

    if block_b is not None:
        bb = _round_up(block_b, sublane)
        if bb < _round_up(B, sublane):
            bb = _round_up(bb, 128)               # keep out/lens lane blocks 128-aligned across steps
    else:
        b_min = _round_up(B, sublane)
        if b_min <= max_bb:
            bb = b_min                            # single grid step; lane dim == full padded batch
        else:
            bb = max(128, (max_bb // 128) * 128)  # multi-step: 128-aligned lane blocks
    b_pad = _round_up(B, bb)

    # T chunk for the in-kernel loop: keep the f32 (tc*bb, H) intermediate around ~2 MiB.
    tc = ((2 << 20) // max(bb * H * 4, 1)) // 8 * 8
    tc = max(8, min(tc, T8))
    T_pad = _round_up(T, tc)

    # Hoisted decoder projection + bias (one XLA matmul for the whole batch):
    #   Linear([h ; enc]) == h @ W[:, :H].T + enc @ W[:, H:].T + b
    dec_bh = decoder_pre_hidden[0]                                   # (B, H)
    dec_proj = dec_bh @ attn_weight[:, :H].T + attn_bias[None, :]    # (B, H) f32
    w_enc = attn_weight[:, H:].T                                     # (H, H)
    v_row = v[None, :].astype(jnp.float32)                           # (1, H)

    if src_len is None:
        lens = jnp.full((B,), T, dtype=jnp.int32)
    else:
        lens = src_len.astype(jnp.int32)

    pad_b = b_pad - B
    pad_t = T_pad - T
    enc = encoder_outputs
    if pad_b or pad_t:                                               # elided when already aligned
        enc = jnp.pad(enc, ((0, pad_t), (0, pad_b), (0, 0)))
    if pad_b:
        dec_proj = jnp.pad(dec_proj, ((0, pad_b), (0, 0)))
    # Padded batch rows get length T -> finite (uniform) softmax, sliced away below.
    lens2d = jnp.pad(lens[None, :], ((0, 0), (0, pad_b)), constant_values=T)

    if matmul_dtype is not None:
        # TODO(synk): ideally encoder_outputs arrives in bf16 upstream so this cast is not
        # a separate HBM pass.
        enc = enc.astype(matmul_dtype)
        w_enc = w_enc.astype(matmul_dtype)

    grid = (b_pad // bb,)

    est_vmem = (2 * T_pad * bb * H * itemsize                        # enc double buffer
                + 2 * bb * H * 4 + 2 * bb * 4                        # dec + lens double buffers
                + 2 * H * H * itemsize + 2 * H * 4                   # w_enc + v (resident, 2 bufs)
                + 3 * T_pad * bb * 4                                 # out double buffer + scores scratch
                + 4 * tc * bb * H * 4)                               # headroom for chunk intermediates
    vmem_limit = None
    if est_vmem > (12 << 20):
        vmem_limit = min(48 << 20, _round_up(est_vmem * 5 // 4, 1 << 20))

    cost = pl.CostEstimate(
        flops=2 * b_pad * T_pad * H * H + 4 * b_pad * T_pad * H,
        transcendentals=b_pad * T_pad * (H + 1),
        bytes_accessed=(T_pad * b_pad * H * itemsize + b_pad * H * 4
                        + H * H * itemsize + H * 4 + b_pad * 4 + T_pad * b_pad * 4))

    out = pl.pallas_call(
        functools.partial(_attention_kernel, t_chunk=tc),
        out_shape=jax.ShapeDtypeStruct((T_pad, b_pad), jnp.float32),
        grid_spec=pltpu.PrefetchScalarGridSpec(
            num_scalar_prefetch=0,
            grid=grid,
            in_specs=[
                pl.BlockSpec((bb, H), lambda b: (b, 0)),              # dec_proj
                pl.BlockSpec((1, bb), lambda b: (0, b)),              # lengths
                pl.BlockSpec((T_pad, bb, H), lambda b: (0, b, 0)),    # encoder outputs (native T,B,H)
                pl.BlockSpec((H, H), lambda b: (0, 0)),               # w_enc (resident)
                pl.BlockSpec((1, H), lambda b: (0, 0)),               # v (resident)
            ],
            out_specs=pl.BlockSpec((T_pad, bb), lambda b: (0, b)),    # time-major score slab
            scratch_shapes=[pltpu.VMEM((T_pad, bb), jnp.float32)],
        ),
        compiler_params=pltpu.CompilerParams(
            dimension_semantics=("parallel",),
            vmem_limit_bytes=vmem_limit),
        cost_estimate=cost,
    )(dec_proj, lens2d, enc, w_enc, v_row)

    # Only the tiny (T, B) result is transposed back to batch-major.
    return jnp.transpose(out[:T, :B])[:, None, :]                     # (B, 1, T)


def _reference_forward(decoder_pre_hidden, encoder_outputs, attn_weight, attn_bias, v,
                       src_len=None):
    # pure-JAX reference mirroring the PyTorch module
    T, B, H = encoder_outputs.shape
    h = jnp.transpose(jnp.tile(decoder_pre_hidden, (T, 1, 1)), (1, 0, 2))   # (B, T, H)
    enc = jnp.transpose(encoder_outputs, (1, 0, 2))                         # (B, T, H)
    cat = jnp.concatenate([h, enc], axis=2)                                 # (B, T, 2H)
    energy = jnp.tanh(cat @ attn_weight.T + attn_bias)                      # (B, T, H)
    scores = jnp.einsum('bth,h->bt', energy, v)                             # (B, T)
    if src_len is not None:
        mask = jnp.arange(T)[None, :] >= src_len[:, None]                   # True -> masked
        scores = jnp.where(mask, -1e18, scores)
    return jax.nn.softmax(scores, axis=1)[:, None, :]                       # (B, 1, T)


if __name__ == "__main__":
    B, T, H = 2, 8, 32

    key = jax.random.PRNGKey(0)
    k_dec, k_enc, k_w, k_b, k_v = jax.random.split(key, 5)

    decoder_pre_hidden = jax.random.normal(k_dec, (1, B, H), dtype=jnp.float32)
    encoder_outputs = jax.random.normal(k_enc, (T, B, H), dtype=jnp.float32)

    lin_stdv = 1.0 / math.sqrt(2 * H)
    attn_weight = jax.random.uniform(k_w, (H, 2 * H), minval=-lin_stdv, maxval=lin_stdv,
                                     dtype=jnp.float32)
    attn_bias = jax.random.uniform(k_b, (H,), minval=-lin_stdv, maxval=lin_stdv,
                                   dtype=jnp.float32)
    v_stdv = 1.0 / math.sqrt(H)
    v = jax.random.uniform(k_v, (H,), minval=-v_stdv, maxval=v_stdv, dtype=jnp.float32)

    fwd = jax.jit(attention_forward)

    # 1) src_len=None path (strict tolerance, f32 operands)
    out = jax.block_until_ready(fwd(decoder_pre_hidden, encoder_outputs,
                                    attn_weight, attn_bias, v))
    ref = _reference_forward(decoder_pre_hidden, encoder_outputs, attn_weight, attn_bias, v)
    assert out.shape == (B, 1, T)
    assert jnp.allclose(out, ref, atol=1e-4, rtol=1e-4), "mismatch vs reference (no mask)"

    # 2) src_len masking path
    src_len = jnp.array([5, 8], dtype=jnp.int32)
    out_m = jax.block_until_ready(
        attention_forward(decoder_pre_hidden, encoder_outputs, attn_weight, attn_bias, v,
                          src_len=src_len))
    ref_m = _reference_forward(decoder_pre_hidden, encoder_outputs, attn_weight, attn_bias, v,
                               src_len=src_len)
    assert out_m.shape == (B, 1, T)
    assert jnp.allclose(out_m, ref_m, atol=1e-4, rtol=1e-4), "mismatch vs reference (masked)"

    # 3) bf16 matmul operands (v6e/v7x fast path) - looser tolerance
    out_bf = jax.block_until_ready(
        attention_forward(decoder_pre_hidden, encoder_outputs, attn_weight, attn_bias, v,
                          matmul_dtype=jnp.bfloat16))
    assert out_bf.shape == (B, 1, T)
    assert jnp.allclose(out_bf, ref, atol=2e-2, rtol=2e-2), "mismatch vs reference (bf16)"

    print("KERNEL_OK")
</pallas_src>

<mosaic_0001>
module attributes {stable_mosaic.version = 11 : i64} {
  func.func @_attention_kernel(%arg0: i32, %arg1: memref<8x32xf32, #tpu.memory_space<vmem>>, %arg2: memref<1x8xi32, #tpu.memory_space<vmem>>, %arg3: memref<8x8x32xf32, #tpu.memory_space<vmem>>, %arg4: memref<32x32xf32, #tpu.memory_space<vmem>>, %arg5: memref<1x32xf32, #tpu.memory_space<vmem>>, %arg6: memref<8x8xf32, #tpu.memory_space<vmem>>, %arg7: memref<8x8xf32, #tpu.memory_space<vmem>>) attributes {dimension_semantics = [#tpu.dimension_semantics<parallel>], iteration_bounds = array<i64: 1>, scalar_prefetch = 0 : i64, scratch_operands = 1 : i64, tpu.core_type = #tpu.core_type<tc>, window_params = [{transform_indices = @transform_0, window_bounds = array<i64: 8, 32>}, {transform_indices = @transform_1, window_bounds = array<i64: 1, 8>}, {transform_indices = @transform_2, window_bounds = array<i64: 8, 8, 32>}, {pipeline_mode = #tpu.pipeline_mode<synchronous>, transform_indices = @transform_3, window_bounds = array<i64: 32, 32>}, {pipeline_mode = #tpu.pipeline_mode<synchronous>, transform_indices = @transform_4, window_bounds = array<i64: 1, 32>}, {transform_indices = @transform_5, window_bounds = array<i64: 8, 8>}]} {
    %c0 = arith.constant 0 : index
    %c0_0 = arith.constant 0 : index
    %0 = vector.load %arg1[%c0, %c0_0] : memref<8x32xf32, #tpu.memory_space<vmem>>, vector<8x32xf32>
    %1 = vector.shape_cast %0 : vector<8x32xf32> to vector<1x8x32xf32>
    %c0_1 = arith.constant 0 : index
    %c0_2 = arith.constant 0 : index
    %2 = vector.load %arg5[%c0_1, %c0_2] : memref<1x32xf32, #tpu.memory_space<vmem>>, vector<1x32xf32>
    %c0_3 = arith.constant 0 : index
    %c0_4 = arith.constant 0 : index
    %3 = vector.load %arg4[%c0_3, %c0_4] : memref<32x32xf32, #tpu.memory_space<vmem>>, vector<32x32xf32>
    %c0_i32 = arith.constant 0 : i32
    %c8_i32 = arith.constant 8 : i32
    %4 = arith.muli %c0_i32, %c8_i32 : i32
    %5 = tpu.assume_multiple %4, 8 : i32
    %6 = arith.index_cast %5 : i32 to index
    %c0_5 = arith.constant 0 : index
    %c0_6 = arith.constant 0 : index
    %7 = vector.load %arg3[%6, %c0_5, %c0_6] : memref<8x8x32xf32, #tpu.memory_space<vmem>>, vector<8x8x32xf32>
    %8 = vector.shape_cast %7 : vector<8x8x32xf32> to vector<64x32xf32>
    %cst = arith.constant dense<0.000000e+00> : vector<64x32xf32>
    %9 = tpu.matmul %8, %3, %cst {dimension_numbers = #tpu.dot_dimension_numbers<[1], [0], [0], [1], [0, 0, 1, 1], [], []>} : vector<64x32xf32>, vector<32x32xf32>, vector<64x32xf32> -> vector<64x32xf32>
    %10 = vector.shape_cast %9 : vector<64x32xf32> to vector<8x8x32xf32>
    %11 = vector.broadcast %1 : vector<1x8x32xf32> to vector<8x8x32xf32>
    %12 = arith.addf %10, %11 : vector<8x8x32xf32>
    %13 = math.tanh %12 : vector<8x8x32xf32>
    %14 = vector.shape_cast %2 : vector<1x32xf32> to vector<1x1x32xf32>
    %15 = vector.broadcast %14 : vector<1x1x32xf32> to vector<8x8x32xf32>
    %16 = arith.mulf %13, %15 : vector<8x8x32xf32>
    %cst_7 = arith.constant dense<0.000000e+00> : vector<8x8xf32>
    %17 = vector.multi_reduction <add>, %16, %cst_7 [2] : vector<8x8x32xf32> to vector<8x8xf32>
    %18 = arith.index_cast %5 : i32 to index
    %c0_8 = arith.constant 0 : index
    %19 = vector.load %arg7[%18, %c0_8] : memref<8x8xf32, #tpu.memory_space<vmem>>, vector<8x8xf32>
    tpu.vector_store %arg7[%18, %c0_8], %17 {strides = array<i32>} : memref<8x8xf32, #tpu.memory_space<vmem>>, vector<8x8xf32>,
    %c1_i32 = arith.constant 1 : i32
    %c0_9 = arith.constant 0 : index
    %c0_10 = arith.constant 0 : index
    %20 = vector.load %arg7[%c0_9, %c0_10] : memref<8x8xf32, #tpu.memory_space<vmem>>, vector<8x8xf32>
    %21 = tpu.iota {dimensions = array<i32: 0>} : vector<8x8xi32>
    %c0_11 = arith.constant 0 : index
    %c0_12 = arith.constant 0 : index
    %22 = vector.load %arg2[%c0_11, %c0_12] : memref<1x8xi32, #tpu.memory_space<vmem>>, vector<1x8xi32>
    %23 = vector.broadcast %22 : vector<1x8xi32> to vector<8x8xi32>
    %24 = arith.cmpi sge, %21, %23 : vector<8x8xi32>
    %cst_13 = arith.constant -9.99999984E+17 : f32
    %25 = vector.broadcast %cst_13 : f32 to vector<8x8xf32>
    %26 = arith.select %24, %25, %20 : vector<8x8xi1>, vector<8x8xf32>
    %cst_14 = arith.constant dense<0xFF800000> : vector<8xf32>
    %27 = vector.multi_reduction <maximumf>, %26, %cst_14 [0] : vector<8x8xf32> to vector<8xf32>
    %28 = vector.shape_cast %27 : vector<8xf32> to vector<1x8xf32>
    %29 = vector.broadcast %28 : vector<1x8xf32> to vector<8x8xf32>
    %30 = arith.subf %26, %29 : vector<8x8xf32>
    %31 = math.exp %30 : vector<8x8xf32>
    %cst_15 = arith.constant dense<0.000000e+00> : vector<8xf32>
    %32 = vector.multi_reduction <add>, %31, %cst_15 [0] : vector<8x8xf32> to vector<8xf32>
    %33 = vector.shape_cast %32 : vector<8xf32> to vector<1x8xf32>
    %34 = vector.broadcast %33 : vector<1x8xf32> to vector<8x8xf32>
    %35 = arith.divf %31, %34 : vector<8x8xf32>
    %c0_16 = arith.constant 0 : index
    %c0_17 = arith.constant 0 : index
    %36 = vector.load %arg6[%c0_16, %c0_17] : memref<8x8xf32, #tpu.memory_space<vmem>>, vector<8x8xf32>
    tpu.vector_store %arg6[%c0_16, %c0_17], %35 {strides = array<i32>} : memref<8x8xf32, #tpu.memory_space<vmem>>, vector<8x8xf32>,
    return
  }
  func.func @transform_0(%arg0: i32) -> (i32, i32) {
    %c0_i32 = arith.constant 0 : i32
    %c0_i32_0 = arith.constant 0 : i32
    return %arg0, %c0_i32 : i32, i32
  }
  func.func @transform_1(%arg0: i32) -> (i32, i32) {
    %c0_i32 = arith.constant 0 : i32
    %c0_i32_0 = arith.constant 0 : i32
    return %c0_i32, %arg0 : i32, i32
  }
  func.func @transform_2(%arg0: i32) -> (i32, i32, i32) {
    %c0_i32 = arith.constant 0 : i32
    %c0_i32_0 = arith.constant 0 : i32
    %c0_i32_1 = arith.constant 0 : i32
    return %c0_i32, %arg0, %c0_i32_0 : i32, i32, i32
  }
  func.func @transform_3(%arg0: i32) -> (i32, i32) {
    %c0_i32 = arith.constant 0 : i32
    %c0_i32_0 = arith.constant 0 : i32
    %c0_i32_1 = arith.constant 0 : i32
    return %c0_i32, %c0_i32_0 : i32, i32
  }
  func.func @transform_4(%arg0: i32) -> (i32, i32) {
    %c0_i32 = arith.constant 0 : i32
    %c0_i32_0 = arith.constant 0 : i32
    %c0_i32_1 = arith.constant 0 : i32
    return %c0_i32, %c0_i32_0 : i32, i32
  }
  func.func @transform_5(%arg0: i32) -> (i32, i32) {
    %c0_i32 = arith.constant 0 : i32
    %c0_i32_0 = arith.constant 0 : i32
    return %c0_i32, %arg0 : i32, i32
  }
}

</mosaic_0001>

<llo_original>
// kernel: attention_forward.1
$region0: #{attention_forward.1}
  #allocation0 [shape = 'u32[]', space=smem, size = 0x4, offset = 0x4, fixed_abs, tag = 'smem constant byte address 0x4 - core index']
  #allocation1 [shape = 'u32[72,128]{1,0:T(1,128)}', space=vmem, size = 0x9000, scoped, tag = 'internal scratch']
  #allocation2 [shape = 'f32[8,8]{1,0:T(8,128)}', space=vmem, size = 0x1000, scoped, tag = 'scratch operand']
  %s0 = inlined_call_operand.vmem [shape: f32[8,32], index: 0, kind: input, shape index: {}]
  %s1 = inlined_call_operand.vmem [shape: s32[1,8], index: 1, kind: input, shape index: {}]
  %s2 = inlined_call_operand.vmem [shape: f32[8,8,32], index: 2, kind: input, shape index: {}]
  %s3 = inlined_call_operand.vmem [shape: f32[32,32], index: 3, kind: input, shape index: {}]
  %s4 = inlined_call_operand.vmem [shape: f32[1,32], index: 4, kind: input, shape index: {}]
  %s5 = inlined_call_operand.vmem [shape: f32[8,8], index: 5, kind: output, shape index: {}]
  %s6 = sld [smem:[#allocation0]]
  $region30: #{attention_forward.1} parent=0
    _
  %s8 = ssub.s32 1, %s6
  %s9 = scalar_select 0, %s8, %s6
  // Predicated region
  $region2: #{attention_forward.1} parent=0 // pred_check
    _
  $region3: #{attention_forward.1} parent=0 // pred_check_branch
    %11 = sbr.rel (0) target = $region5
  $region4: #{attention_forward.1} parent=0 // pred_region
    _
  $region5: #{attention_forward.1} parent=0 // pred_fallthru
    _
  // Predicated region
  $region6: #{attention_forward.1} parent=0 // pred_check
    _
  $region7: #{attention_forward.1} parent=0 // pred_check_branch
    %13 = sbr.rel (0) target = $region9
  $region8: #{attention_forward.1} parent=0 // pred_region
    _
  $region9: #{attention_forward.1} parent=0 // pred_fallthru
    _
  // Predicated region
  $region10: #{attention_forward.1} parent=0 // pred_check
    _
  $region11: #{attention_forward.1} parent=0 // pred_check_branch
    %15 = sbr.rel (0) target = $region13
  $region12: #{attention_forward.1} parent=0 // pred_region
    _
  $region13: #{attention_forward.1} parent=0 // pred_fallthru
    _
  // Predicated region
  $region14: #{attention_forward.1} parent=0 // pred_check
    _
  $region15: #{attention_forward.1} parent=0 // pred_check_branch
    %17 = sbr.rel (0) target = $region17
  $region16: #{attention_forward.1} parent=0 // pred_region
    _
  $region17: #{attention_forward.1} parent=0 // pred_fallthru
    _
  // Predicated region
  $region18: #{attention_forward.1} parent=0 // pred_check
    _
  $region19: #{attention_forward.1} parent=0 // pred_check_branch
    %19 = sbr.rel (0) target = $region21
  $region20: #{attention_forward.1} parent=0 // pred_region
    _
  $region21: #{attention_forward.1} parent=0 // pred_fallthru
    _
  %v20 = vld [vmem:[%s0] sm:$0xff]
  %v21 = vld [vmem:[%s4] sm:$0x1]
  %v22 = vld [vmem:[%s3] sm:$0xff]
  %v23 = vld [vmem:[%s3 + $0x8] sm:$0xff]
  %v24 = vld [vmem:[%s3 + $0x10] sm:$0xff]
  %v25 = vld [vmem:[%s3 + $0x18] sm:$0xff]
  %s26 = smul.u32 0, 8
  %s27 = scalar_lea.vmem %s2, %s26
  %v28 = vld [vmem:[%s27] sm:$0xff]
  %v29 = vld [vmem:[%s27 + $0x8] sm:$0xff]
  %v30 = vld [vmem:[%s27 + $0x10] sm:$0xff]
  %v31 = vld [vmem:[%s27 + $0x18] sm:$0xff]
  %v32 = vld [vmem:[%s27 + $0x20] sm:$0xff]
  %v33 = vld [vmem:[%s27 + $0x28] sm:$0xff]
  %v34 = vld [vmem:[%s27 + $0x30] sm:$0xff]
  %v35 = vld [vmem:[%s27 + $0x38] sm:$0xff]
  %vm36 = vcmask 261120
  %v38 = vsel %vm36, %v28, 0
  %v41 = vsel %vm36, %v29, 0
  %v44 = vsel %vm36, %v30, 0
  %v47 = vsel %vm36, %v31, 0
  %v50 = vsel %vm36, %v32, 0
  %v53 = vsel %vm36, %v33, 0
  %v56 = vsel %vm36, %v34, 0
  %v59 = vsel %vm36, %v35, 0
  %61 = vmatpush.msra.mxu0 0.0
  %62 = vmatpush.msra.mxu0 0.0
  %63 = vmatpush.msra.mxu0 0.0
  %64 = vmatpush.msra.mxu0 0.0
  %65 = vmatpush.msra.mxu0 0.0
  %66 = vmatpush.msra.mxu0 0.0
  %67 = vmatpush.msra.mxu0 0.0
  %68 = vmatpush.msra.mxu0 0.0
  %69 = vmatpush.msra.mxu0 0.0
  %70 = vmatpush.msra.mxu0 0.0
  %71 = vmatpush.msra.mxu0 0.0
  %72 = vmatpush.msra.mxu0 0.0
  %73 = vmatpush.msra.mxu0 %v25
  %74 = vmatpush.msra.mxu0 %v24
  %75 = vmatpush.msra.mxu0 %v23
  %76 = vmatpush.msra.mxu0 %v22
  %77 = vmatmul.f32.gmra.mxu0 %v38
  %v78 = vpop.f32.mrf.mxu0
  %v79 = vadd.f32 0.0, %v78
  %80 = vmatmul.f32.gmra.mxu0 %v41
  %v81 = vpop.f32.mrf.mxu0
  %v82 = vadd.f32 0.0, %v81
  %83 = vmatmul.f32.gmra.mxu0 %v44
  %v84 = vpop.f32.mrf.mxu0
  %v85 = vadd.f32 0.0, %v84
  %86 = vmatmul.f32.gmra.mxu0 %v47
  %v87 = vpop.f32.mrf.mxu0
  %v88 = vadd.f32 0.0, %v87
  %89 = vmatmul.f32.gmra.mxu0 %v50
  %v90 = vpop.f32.mrf.mxu0
  %v91 = vadd.f32 0.0, %v90
  %92 = vmatmul.f32.gmra.mxu0 %v53
  %v93 = vpop.f32.mrf.mxu0
  %v94 = vadd.f32 0.0, %v93
  %95 = vmatmul.f32.gmra.mxu0 %v56
  %v96 = vpop.f32.mrf.mxu0
  %v97 = vadd.f32 0.0, %v96
  %98 = vmatmul.f32.gmra.mxu0 %v59
  %v99 = vpop.f32.mrf.mxu0
  %v100 = vadd.f32 0.0, %v99
  %101 = vdwg.mxu0
  %v102 = vadd.f32 %v79, %v20
  %v103 = vadd.f32 %v82, %v20
  %v104 = vadd.f32 %v85, %v20
  %v105 = vadd.f32 %v88, %v20
  %v106 = vadd.f32 %v91, %v20
  %v107 = vadd.f32 %v94, %v20
  %v108 = vadd.f32 %v97, %v20
  %v109 = vadd.f32 %v100, %v20
  %v110 = vtanh.pop %v102
  %v111 = vtanh.pop %v103
  %v112 = vtanh.pop %v104
  %v113 = vtanh.pop %v105
  %v114 = vtanh.pop %v106
  %v115 = vtanh.pop %v107
  %v116 = vtanh.pop %v108
  %v117 = vtanh.pop %v109
  %v119 = vperm.slane %v21, 0
  %v121 = vmul.f32 %v110, %v119
  %v122 = vmul.f32 %v111, %v119
  %v123 = vmul.f32 %v112, %v119
  %v124 = vmul.f32 %v113, %v119
  %v125 = vmul.f32 %v114, %v119
  %v126 = vmul.f32 %v115, %v119
  %v127 = vmul.f32 %v116, %v119
  %v128 = vmul.f32 %v117, %v119
  %v129 = vsel %vm36, %v121, 0.0
  %130 = vadd.xlane.f32.xlu0 %v129
  %v131 = vpop.xlane.xlu0 %130
  %v132 = vsel %vm36, %v122, 0.0
  %133 = vadd.xlane.f32.xlu0 %v132
  %v134 = vpop.xlane.xlu0 %133
  %v135 = vsel %vm36, %v123, 0.0
  %136 = vadd.xlane.f32.xlu0 %v135
  %v137 = vpop.xlane.xlu0 %136
  %v138 = vsel %vm36, %v124, 0.0
  %139 = vadd.xlane.f32.xlu0 %v138
  %v140 = vpop.xlane.xlu0 %139
  %v141 = vsel %vm36, %v125, 0.0
  %142 = vadd.xlane.f32.xlu0 %v141
  %v143 = vpop.xlane.xlu0 %142
  %v144 = vsel %vm36, %v126, 0.0
  %145 = vadd.xlane.f32.xlu0 %v144
  %v146 = vpop.xlane.xlu0 %145
  %v147 = vsel %vm36, %v127, 0.0
  %148 = vadd.xlane.f32.xlu0 %v147
  %v149 = vpop.xlane.xlu0 %148
  %v150 = vsel %vm36, %v128, 0.0
  %151 = vadd.xlane.f32.xlu0 %v150
  %v152 = vpop.xlane.xlu0 %151
  %v161 = vlaneseq
  %v162 = vand.u32 %v161, 127
  %v163 = vperm.slane %v131, %v162
  %v164 = vperm.slane %v134, %v162
  %v165 = vperm.slane %v137, %v162
  %v166 = vperm.slane %v140, %v162
  %v167 = vperm.slane %v143, %v162
  %v168 = vperm.slane %v146, %v162
  %v169 = vperm.slane %v149, %v162
  %v170 = vperm.slane %v152, %v162
  %vm171 = vcmask 1041409
  %v172 = vsel %vm171, %v164, %v163
  %vm173 = vcmask 1042434
  %v174 = vsel %vm173, %v165, %v172
  %vm175 = vcmask 1043459
  %v176 = vsel %vm175, %v166, %v174
  %vm177 = vcmask 1044484
  %v178 = vsel %vm177, %v167, %v176
  %vm179 = vcmask 1045509
  %v180 = vsel %vm179, %v168, %v178
  %vm181 = vcmask 1046534
  %v182 = vsel %vm181, %v169, %v180
  %vm183 = vcmask 1047559
  %v184 = vsel %vm183, %v170, %v182
  %vm186 = vcmask 64512
  %187 = vst.msk [vmem:[#allocation2] sm:$0xff] %vm186, %v184
  %v188 = vld [vmem:[#allocation2] sm:$0xff]
  %v189 = vlaneseq
  %v190 = vshrl.u32 %v189, 7
  %v191 = vld [vmem:[%s1] sm:$0x1]
  %v192 = vperm.slane %v191, 0
  %vm193 = vcmp.ge.s32.totalorder %v190, %v192
  %v194 = vsel %vm193, -1e+18, %v188
  %v195 = vsel %vm186, %v194, -inf
  %v196 = vrot.slane %v195, 4
  %v197 = vmax.f32 %v195, %v196
  %v198 = vrot.slane %v197, 2
  %v199 = vmax.f32 %v197, %v198
  %v200 = vrot.slane %v199, 1
  %v201 = vmax.f32 %v199, %v200
  %v202 = vsub.f32 %v194, %v201
  %v203 = vmul.f32 %v202, 1.442695
  %v204 = vpow.pop %v203
  %v205 = vsel %vm186, %v204, 0.0
  %v206 = vrot.slane %v205, 4
  %v207 = vadd.f32 %v205, %v206
  %v208 = vrot.slane %v207, 2
  %v209 = vadd.f32 %v207, %v208
  %v210 = vrot.slane %v209, 1
  %v211 = vadd.f32 %v209, %v210
  %v212 = vrcp.pop %v211
  %v213 = vmul.f32 %v211, %v212
  %v214 = vsub.f32 1.0, %v213
  %v215 = vmul.f32 %v212, %v214
  %v216 = vadd.f32 %v212, %v215
  %vm217 = vweird.f32 %v211
  %vm218 = vweird.f32 %v212
  %vm219 = vmor %vm217, %vm218
  %v220 = vsel %vm219, %v212, %v216
  %v221 = vand.u32 2147483647, %v211
  %vm222 = vcmp.eq.f32.partialorder %v221, 8.507059e+37
  %v223 = vand.u32 %v211, 2147483648
  %v224 = vor.u32 1.1754944e-38, %v223
  %v225 = vsel %vm222, %v224, %v220
  %v226 = vmul.f32 %v204, %v225
  %227 = vst.msk [vmem:[%s5] sm:$0xff] %vm186, %v226
  // Predicated region
  $region22: #{attention_forward.1} parent=0 // pred_check
    _
  $region23: #{attention_forward.1} parent=0 // pred_check_branch
    %229 = sbr.rel (0) target = $region25
  $region24: #{attention_forward.1} parent=0 // pred_region
    _
  $region25: #{attention_forward.1} parent=0 // pred_fallthru
    _
  // Predicated region
  $region26: #{attention_forward.1} parent=0 // pred_check
    _
  $region27: #{attention_forward.1} parent=0 // pred_check_branch
    %231 = sbr.rel (0) target = $region29
  $region28: #{attention_forward.1} parent=0 // pred_region
    _
  $region29: #{attention_forward.1} parent=0 // pred_fallthru
    _

</llo_original>
